<compile_context>
chip_gen: v6e
topology: v6e:2x2x1
jax: 0.10.0
libtpu: 0.0.40
codegen_flags: <defaults>
</compile_context>

<pallas_src>
import jax
import jax.numpy as jnp
from jax import lax
from jax.experimental import pallas as pl
from jax.experimental.pallas import tpu as pltpu

LANES = 128
MAX_TILE_ROWS = 1024  # (1024, 128) f32 block = 512 KiB per input


def _make_dice_kernel(rows, tile_rows):
    needs_mask = (rows % tile_rows) != 0  # trace-time constant

    def kernel(x_ref, y_ref, o_ref, acc_xy_ref, acc_dn_ref):
        i = pl.program_id(0)

        @pl.when(i == 0)
        def _():
            acc_xy_ref[...] = jnp.zeros_like(acc_xy_ref)
            acc_dn_ref[...] = jnp.zeros_like(acc_dn_ref)

        x = x_ref[...].astype(jnp.float32)
        y = y_ref[...].astype(jnp.float32)

        if needs_mask:
            # Last grid block sticks out past `rows`: zero the out-of-bounds
            # rows.  Use where (not multiply) so OOB garbage (possibly NaN/Inf)
            # cannot poison the sums.
            valid_rows = rows - i * tile_rows
            row_ids = lax.broadcasted_iota(jnp.int32, (tile_rows, LANES), 0)
            keep = row_ids < valid_rows
            x = jnp.where(keep, x, 0.0)
            y = jnp.where(keep, y, 0.0)

        # Pure-VPU elementwise accumulation into VMEM; no per-step XLU reductions.
        acc_xy_ref[...] += x * y
        acc_dn_ref[...] += x * x + y * y

        @pl.when(i == pl.num_programs(0) - 1)
        def _():
            intersect = jnp.sum(acc_xy_ref[...])
            denominator = jnp.sum(acc_dn_ref[...])
            # torch's try/except ZeroDivisionError never triggers for tensor
            # division, so semantics are exactly 1 - 2 * intersect / denominator.
            loss = 1.0 - 2.0 * (intersect / denominator)
            o_ref[...] = jnp.full((1, 1), loss, jnp.float32)

    return kernel


def dice_loss(x, y):
    assert x.shape == y.shape, (
        f"'input' and 'target' must have the same shape, got {x.shape} and {y.shape}"
    )
    # Free reshapes (row-major contiguous); dtype preserved — kernel casts per tile.
    xf = x.reshape(-1)
    yf = y.reshape(-1)
    n = xf.shape[0]

    n_pad = pl.cdiv(n, LANES) * LANES
    if n_pad != n:
        # Rare ragged tail (<128 elems): minimal zero pad so the (rows, 128)
        # reshape is possible; zeros contribute nothing to any of the sums.
        xf = jnp.pad(xf, (0, n_pad - n))
        yf = jnp.pad(yf, (0, n_pad - n))

    rows = n_pad // LANES
    tile_rows = min(MAX_TILE_ROWS, rows)
    x2d = xf.reshape(rows, LANES)
    y2d = yf.reshape(rows, LANES)
    num_blocks = pl.cdiv(rows, tile_rows)

    out = pl.pallas_call(
        _make_dice_kernel(rows, tile_rows),
        out_shape=jax.ShapeDtypeStruct((1, 1), jnp.float32),
        grid_spec=pltpu.PrefetchScalarGridSpec(
            num_scalar_prefetch=0,
            grid=(num_blocks,),
            in_specs=[
                pl.BlockSpec((tile_rows, LANES), lambda i: (i, 0)),
                pl.BlockSpec((tile_rows, LANES), lambda i: (i, 0)),
            ],
            out_specs=pl.BlockSpec((1, 1), lambda i: (0, 0)),
            scratch_shapes=[
                pltpu.VMEM((tile_rows, LANES), jnp.float32),  # sum(x*y) partials
                pltpu.VMEM((tile_rows, LANES), jnp.float32),  # sum(x*x)+sum(y*y) partials
            ],
        ),
        compiler_params=pltpu.CompilerParams(
            dimension_semantics=("arbitrary",),  # sequential reduction over tiles
        ),
    )(x2d, y2d)

    return out[0, 0]  # scalar, matching torch's 0-dim return


def _dice_ref(x, y):
    xf = x.reshape(-1).astype(jnp.float32)
    yf = y.reshape(-1).astype(jnp.float32)
    intersect = jnp.sum(xf * yf)
    denom = jnp.sum(xf * xf) + jnp.sum(yf * yf)
    return 1.0 - 2.0 * (intersect / denom)


if __name__ == "__main__":
    key = jax.random.PRNGKey(0)
    k1, k2 = jax.random.split(key)
    # Module has no parameters; inputs shaped like (N, C, H, W) predictions/targets.
    x = jax.nn.sigmoid(jax.random.normal(k1, (2, 4, 16, 16), dtype=jnp.float32))
    t = (jax.random.uniform(k2, (2, 4, 16, 16)) > 0.5).astype(jnp.float32)

    loss = jax.block_until_ready(dice_loss(x, t))
    ref = jax.block_until_ready(_dice_ref(x, t))
    assert jnp.allclose(loss, ref, rtol=1e-5, atol=1e-6), (loss, ref)
    print("KERNEL_OK")
</pallas_src>

<mosaic_0001>
module attributes {stable_mosaic.version = 11 : i64} {
  func.func @kernel(%arg0: i32, %arg1: memref<16x128xf32, #tpu.memory_space<vmem>>, %arg2: memref<16x128xf32, #tpu.memory_space<vmem>>, %arg3: memref<1x1xf32, #tpu.memory_space<vmem>>, %arg4: memref<16x128xf32, #tpu.memory_space<vmem>>, %arg5: memref<16x128xf32, #tpu.memory_space<vmem>>) attributes {dimension_semantics = [#tpu.dimension_semantics<arbitrary>], iteration_bounds = array<i64: 1>, scalar_prefetch = 0 : i64, scratch_operands = 2 : i64, tpu.core_type = #tpu.core_type<tc>, window_params = [{transform_indices = @transform_0, window_bounds = array<i64: 16, 128>}, {transform_indices = @transform_1, window_bounds = array<i64: 16, 128>}, {pipeline_mode = #tpu.pipeline_mode<synchronous>, transform_indices = @transform_2, window_bounds = array<i64: 1, 1>}]} {
    %c0_i32 = arith.constant 0 : i32
    %0 = arith.cmpi eq, %arg0, %c0_i32 : i32
    %1 = arith.extui %0 : i1 to i32
    %c0_i32_0 = arith.constant 0 : i32
    %2 = arith.cmpi ne, %1, %c0_i32_0 : i32
    scf.if %2 {
      %cst = arith.constant 0.000000e+00 : f32
      %18 = vector.broadcast %cst : f32 to vector<16x128xf32>
      %c0_14 = arith.constant 0 : index
      %c0_15 = arith.constant 0 : index
      %19 = vector.load %arg4[%c0_14, %c0_15] : memref<16x128xf32, #tpu.memory_space<vmem>>, vector<16x128xf32>
      tpu.vector_store %arg4[%c0_14, %c0_15], %18 {strides = array<i32>} : memref<16x128xf32, #tpu.memory_space<vmem>>, vector<16x128xf32>,
      %cst_16 = arith.constant 0.000000e+00 : f32
      %20 = vector.broadcast %cst_16 : f32 to vector<16x128xf32>
      %c0_17 = arith.constant 0 : index
      %c0_18 = arith.constant 0 : index
      %21 = vector.load %arg5[%c0_17, %c0_18] : memref<16x128xf32, #tpu.memory_space<vmem>>, vector<16x128xf32>
      tpu.vector_store %arg5[%c0_17, %c0_18], %20 {strides = array<i32>} : memref<16x128xf32, #tpu.memory_space<vmem>>, vector<16x128xf32>,
    } else {
    }
    %c0 = arith.constant 0 : index
    %c0_1 = arith.constant 0 : index
    %3 = vector.load %arg1[%c0, %c0_1] : memref<16x128xf32, #tpu.memory_space<vmem>>, vector<16x128xf32>
    %c0_2 = arith.constant 0 : index
    %c0_3 = arith.constant 0 : index
    %4 = vector.load %arg2[%c0_2, %c0_3] : memref<16x128xf32, #tpu.memory_space<vmem>>, vector<16x128xf32>
    %c0_4 = arith.constant 0 : index
    %c0_5 = arith.constant 0 : index
    %5 = vector.load %arg4[%c0_4, %c0_5] : memref<16x128xf32, #tpu.memory_space<vmem>>, vector<16x128xf32>
    %6 = arith.mulf %3, %4 : vector<16x128xf32>
    %7 = arith.addf %5, %6 : vector<16x128xf32>
    %c0_6 = arith.constant 0 : index
    %c0_7 = arith.constant 0 : index
    %8 = vector.load %arg4[%c0_6, %c0_7] : memref<16x128xf32, #tpu.memory_space<vmem>>, vector<16x128xf32>
    tpu.vector_store %arg4[%c0_6, %c0_7], %7 {strides = array<i32>} : memref<16x128xf32, #tpu.memory_space<vmem>>, vector<16x128xf32>,
    %c0_8 = arith.constant 0 : index
    %c0_9 = arith.constant 0 : index
    %9 = vector.load %arg5[%c0_8, %c0_9] : memref<16x128xf32, #tpu.memory_space<vmem>>, vector<16x128xf32>
    %10 = arith.mulf %3, %3 : vector<16x128xf32>
    %11 = arith.mulf %4, %4 : vector<16x128xf32>
    %12 = arith.addf %10, %11 : vector<16x128xf32>
    %13 = arith.addf %9, %12 : vector<16x128xf32>
    %c0_10 = arith.constant 0 : index
    %c0_11 = arith.constant 0 : index
    %14 = vector.load %arg5[%c0_10, %c0_11] : memref<16x128xf32, #tpu.memory_space<vmem>>, vector<16x128xf32>
    tpu.vector_store %arg5[%c0_10, %c0_11], %13 {strides = array<i32>} : memref<16x128xf32, #tpu.memory_space<vmem>>, vector<16x128xf32>,
    %c0_i32_12 = arith.constant 0 : i32
    %15 = arith.cmpi eq, %arg0, %c0_i32_12 : i32
    %16 = arith.extui %15 : i1 to i32
    %c0_i32_13 = arith.constant 0 : i32
    %17 = arith.cmpi ne, %16, %c0_i32_13 : i32
    scf.if %17 {
      %c0_14 = arith.constant 0 : index
      %c0_15 = arith.constant 0 : index
      %18 = vector.load %arg4[%c0_14, %c0_15] : memref<16x128xf32, #tpu.memory_space<vmem>>, vector<16x128xf32>
      %19 = vector.shape_cast %18 : vector<16x128xf32> to vector<1x16x128xf32>
      %cst = arith.constant dense<0.000000e+00> : vector<1xf32>
      %20 = vector.multi_reduction <add>, %19, %cst [1, 2] : vector<1x16x128xf32> to vector<1xf32>
      %21 = vector.shape_cast %20 : vector<1xf32> to vector<1x1x1xf32>
      %22 = vector.extract %21[0, 0, 0] : f32 from vector<1x1x1xf32>
      %c0_16 = arith.constant 0 : index
      %c0_17 = arith.constant 0 : index
      %23 = vector.load %arg5[%c0_16, %c0_17] : memref<16x128xf32, #tpu.memory_space<vmem>>, vector<16x128xf32>
      %24 = vector.shape_cast %23 : vector<16x128xf32> to vector<1x16x128xf32>
      %cst_18 = arith.constant dense<0.000000e+00> : vector<1xf32>
      %25 = vector.multi_reduction <add>, %24, %cst_18 [1, 2] : vector<1x16x128xf32> to vector<1xf32>
      %26 = vector.shape_cast %25 : vector<1xf32> to vector<1x1x1xf32>
      %27 = vector.extract %26[0, 0, 0] : f32 from vector<1x1x1xf32>
      %28 = arith.divf %22, %27 : f32
      %cst_19 = arith.constant 2.000000e+00 : f32
      %29 = arith.mulf %cst_19, %28 : f32
      %cst_20 = arith.constant 1.000000e+00 : f32
      %30 = arith.subf %cst_20, %29 : f32
      %31 = vector.broadcast %30 : f32 to vector<1x1xf32>
      %c0_21 = arith.constant 0 : index
      %c0_22 = arith.constant 0 : index
      %32 = vector.load %arg3[%c0_21, %c0_22] : memref<1x1xf32, #tpu.memory_space<vmem>>, vector<1x1xf32>
      tpu.vector_store %arg3[%c0_21, %c0_22], %31 {strides = array<i32>} : memref<1x1xf32, #tpu.memory_space<vmem>>, vector<1x1xf32>,
    } else {
    }
    return
  }
  func.func @transform_0(%arg0: i32) -> (i32, i32) {
    %c0_i32 = arith.constant 0 : i32
    %c0_i32_0 = arith.constant 0 : i32
    return %arg0, %c0_i32 : i32, i32
  }
  func.func @transform_1(%arg0: i32) -> (i32, i32) {
    %c0_i32 = arith.constant 0 : i32
    %c0_i32_0 = arith.constant 0 : i32
    return %arg0, %c0_i32 : i32, i32
  }
  func.func @transform_2(%arg0: i32) -> (i32, i32) {
    %c0_i32 = arith.constant 0 : i32
    %c0_i32_0 = arith.constant 0 : i32
    %c0_i32_1 = arith.constant 0 : i32
    return %c0_i32, %c0_i32_0 : i32, i32
  }
}

</mosaic_0001>

<llo_original>
// kernel: tpu_custom_call.1
$region0: #{tpu_custom_call.1}
  #allocation0 [shape = 'u32[]', space=smem, size = 0x4, offset = 0x4, fixed_abs, tag = 'smem constant byte address 0x4 - core index']
  #allocation1 [shape = 'u32[144,128]{1,0:T(1,128)}', space=vmem, size = 0x12000, scoped, tag = 'internal scratch']
  #allocation2 [shape = 'f32[16,128]{1,0:T(8,128)}', space=vmem, size = 0x2000, scoped, tag = 'scratch operand']
  #allocation3 [shape = 'f32[16,128]{1,0:T(8,128)}', space=vmem, size = 0x2000, scoped, tag = 'scratch operand']
  %s0 = inlined_call_operand.hbm [shape: f32[16,128], index: 0, kind: input, shape index: {}]
  %s1 = inlined_call_operand.hbm [shape: f32[16,128], index: 1, kind: input, shape index: {}]
  %s2 = inlined_call_operand.hbm [shape: f32[1,1], index: 2, kind: output, shape index: {}]
  %s3 = sld [smem:[#allocation0]]
  $region34: #{tpu_custom_call.1} parent=0
    _
  %s5 = ssub.s32 1, %s3
  %s6 = scalar_select 0, %s5, %s3
  $region1: #{tpu_custom_call.1} parent=0
    #allocation4 [shape = 'u8[8192]{0}', space=vmem, size = 0x2000, scoped, tag = 'input window, operand 0, single buffered']
    #allocation5 [shape = 's32[1]{0}', space=sflag, size = 0x4, scoped, tag = 'scoped memory for tpu_custom_call.1']
    #allocation6 [shape = 's32[1]{0}', space=sflag, size = 0x4, scoped, tag = 'scoped memory for tpu_custom_call.1']
    #allocation7 [shape = 'u8[8192]{0}', space=vmem, size = 0x2000, scoped, tag = 'input window, operand 1, single buffered']
    #allocation8 [shape = 's32[1]{0}', space=sflag, size = 0x4, scoped, tag = 'scoped memory for tpu_custom_call.1']
    #allocation9 [shape = 'u8[512]{0}', space=vmem, size = 0x400, scoped, tag = 'output window, operand 0, single buffered']
    %7 = vsyncpa [#allocation5], 0
    %8 = vsyncpa [#allocation8], 0
    %9 = vsyncpa [#allocation6], 0
    // Predicated region
    $region2: #{tpu_custom_call.1} parent=1 // pred_check
      _
    $region3: #{tpu_custom_call.1} parent=1 // pred_check_branch
      %11 = sbr.rel (0) target = $region5
    $region4: #{tpu_custom_call.1} parent=1 // pred_region
      %s13 = ssub.s32 256, 256
      %14 = vsyncadd [#allocation5], %s13
      %s15 = sshll.u32 [#allocation4], 4
      %s16 = int_to_ptr.vmem [resolvable:$true] %s15
      %21 = dma.hbm_to_vmem [thread:$0]  %s0, 256, %s16, [#allocation5], 128, 128, 8
    $region5: #{tpu_custom_call.1} parent=1 // pred_fallthru
      _
    // Predicated region
    $region6: #{tpu_custom_call.1} parent=1 // pred_check
      _
    $region7: #{tpu_custom_call.1} parent=1 // pred_check_branch
      %23 = sbr.rel (0) target = $region9
    $region8: #{tpu_custom_call.1} parent=1 // pred_region
      %s25 = ssub.s32 256, 256
      %26 = vsyncadd [#allocation8], %s25
      %s27 = sshll.u32 [#allocation7], 4
      %s28 = int_to_ptr.vmem [resolvable:$true] %s27
      %33 = dma.hbm_to_vmem [thread:$0]  %s1, 256, %s28, [#allocation8], 128, 128, 8
    $region9: #{tpu_custom_call.1} parent=1 // pred_fallthru
      _
    // Predicated region
    $region10: #{tpu_custom_call.1} parent=1 // pred_check
      _
    $region11: #{tpu_custom_call.1} parent=1 // pred_check_branch
      %35 = sbr.rel (0) target = $region13
    $region12: #{tpu_custom_call.1} parent=1 // pred_region
      %36 = dma.done [#allocation5], 256
    $region13: #{tpu_custom_call.1} parent=1 // pred_fallthru
      _
    // Predicated region
    $region14: #{tpu_custom_call.1} parent=1 // pred_check
      _
    $region15: #{tpu_custom_call.1} parent=1 // pred_check_branch
      %38 = sbr.rel (0) target = $region17
    $region16: #{tpu_custom_call.1} parent=1 // pred_region
      %39 = dma.done [#allocation8], 256
    $region17: #{tpu_custom_call.1} parent=1 // pred_fallthru
      _
    %p40 = scmp.eq.s32.totalorder 0, 0
    // Predicated region
    $region18: #{tpu_custom_call.1} parent=1 // pred_check
      %p41 = pneg %p40
    $region19: #{tpu_custom_call.1} parent=1 // pred_check_branch
      %43 = sbr.rel (%p41) target = $region21
    $region20: #{tpu_custom_call.1} parent=1 // pred_region
      %44 = vst [vmem:[#allocation2] sm:$0xff] 0.0
      %45 = vst [vmem:[#allocation2 + $0x8] sm:$0xff] 0.0
      %46 = vst [vmem:[#allocation3] sm:$0xff] 0.0
      %47 = vst [vmem:[#allocation3 + $0x8] sm:$0xff] 0.0
    $region21: #{tpu_custom_call.1} parent=1 // pred_fallthru
      _
    %v48 = vld [vmem:[#allocation4] sm:$0xff]
    %v49 = vld [vmem:[#allocation4 + $0x8] sm:$0xff]
    %v50 = vld [vmem:[#allocation7] sm:$0xff]
    %v51 = vld [vmem:[#allocation7 + $0x8] sm:$0xff]
    %v52 = vld [vmem:[#allocation2] sm:$0xff]
    %v53 = vld [vmem:[#allocation2 + $0x8] sm:$0xff]
    %v54 = vmul.f32 %v48, %v50
    %v55 = vmul.f32 %v49, %v51
    %v56 = vadd.f32 %v52, %v54
    %v57 = vadd.f32 %v53, %v55
    %58 = vst [vmem:[#allocation2] sm:$0xff] %v56
    %59 = vst [vmem:[#allocation2 + $0x8] sm:$0xff] %v57
    %v60 = vld [vmem:[#allocation3] sm:$0xff]
    %v61 = vld [vmem:[#allocation3 + $0x8] sm:$0xff]
    %v62 = vmul.f32 %v48, %v48
    %v63 = vmul.f32 %v49, %v49
    %v64 = vmul.f32 %v50, %v50
    %v65 = vmul.f32 %v51, %v51
    %v66 = vadd.f32 %v62, %v64
    %v67 = vadd.f32 %v63, %v65
    %v68 = vadd.f32 %v60, %v66
    %v69 = vadd.f32 %v61, %v67
    %70 = vst [vmem:[#allocation3] sm:$0xff] %v68
    %71 = vst [vmem:[#allocation3 + $0x8] sm:$0xff] %v69
    // Predicated region
    $region22: #{tpu_custom_call.1} parent=1 // pred_check
      %p72 = pneg %p40
    $region23: #{tpu_custom_call.1} parent=1 // pred_check_branch
      %74 = sbr.rel (%p72) target = $region25
    $region24: #{tpu_custom_call.1} parent=1 // pred_region
      %v75 = vld [vmem:[#allocation2] sm:$0xff]
      %v76 = vld [vmem:[#allocation2 + $0x8] sm:$0xff]
      %v77 = vadd.f32 %v75, %v76
      %78 = vadd.xlane.f32.xlu0 %v77
      %v79 = vpop.xlane.xlu0 %78
      %v80 = vrot.slane %v79, 4
      %v81 = vadd.f32 %v79, %v80
      %v82 = vrot.slane %v81, 2
      %v83 = vadd.f32 %v81, %v82
      %v84 = vrot.slane %v83, 1
      %v85 = vadd.f32 %v83, %v84
      %s86 = vtos %v85
      %v87 = vld [vmem:[#allocation3] sm:$0xff]
      %v88 = vld [vmem:[#allocation3 + $0x8] sm:$0xff]
      %v89 = vadd.f32 %v87, %v88
      %90 = vadd.xlane.f32.xlu0 %v89
      %v91 = vpop.xlane.xlu0 %90
      %v92 = vrot.slane %v91, 4
      %v93 = vadd.f32 %v91, %v92
      %v94 = vrot.slane %v93, 2
      %v95 = vadd.f32 %v93, %v94
      %v96 = vrot.slane %v95, 1
      %v97 = vadd.f32 %v95, %v96
      %s98 = vtos %v97
      %v99 = vstv %s98
      %v100 = vrcp.pop %v99
      %s101 = vtos %v100
      %s102 = smul.f32 %s86, %s101
      %s103 = smul.f32 %s102, 2.0
      %s104 = ssub.f32 1.0, %s103
      %v105 = vstv %s104
      %vm106 = vcmask 0
      %107 = vst.msk [vmem:[#allocation9] sm:$0x1] %vm106, %v105
    $region25: #{tpu_custom_call.1} parent=1 // pred_fallthru
      _
    // Predicated region
    $region26: #{tpu_custom_call.1} parent=1 // pred_check
      _
    $region27: #{tpu_custom_call.1} parent=1 // pred_check_branch
      %109 = sbr.rel (0) target = $region29
    $region28: #{tpu_custom_call.1} parent=1 // pred_region
      %s111 = ssub.s32 16, 16
      %112 = vsyncadd [#allocation6], %s111
      %s114 = sshll.u32 [#allocation9], 4
      %s115 = int_to_ptr.vmem [resolvable:$true] %s114
      %117 = dma.vmem_to_hbm [thread:$0]  %s115, 16, %s2, [#allocation6]
    $region29: #{tpu_custom_call.1} parent=1 // pred_fallthru
      _
    // Predicated region
    $region30: #{tpu_custom_call.1} parent=1 // pred_check
      _
    $region31: #{tpu_custom_call.1} parent=1 // pred_check_branch
      %119 = sbr.rel (0) target = $region33
    $region32: #{tpu_custom_call.1} parent=1 // pred_region
      %120 = dma.done [#allocation6], 16
    $region33: #{tpu_custom_call.1} parent=1 // pred_fallthru
      _
    %121 = vsyncpa [#allocation5], 1
    %122 = vsyncpa [#allocation8], 1
    %123 = vsyncpa [#allocation6], 1

</llo_original>
